<compile_context>
chip_gen: v5e
topology: v5e:2x2
jax: 0.10.0
libtpu: 0.0.40
codegen_flags: <defaults>
</compile_context>

<pallas_src>
import jax
import jax.numpy as jnp
from jax.experimental import pallas as pl
from jax.experimental.pallas import tpu as pltpu


def _snapshot_encoder_kernel(x_ref, wp_ref, bp_ref, wo_ref, c_ref, out_ref):
    # x_ref  : (TM, in_feat_p)     row tile of selected paper features
    # wp_ref : (in_feat_p, out_feat_p)   fc_paper weight
    # bp_ref : (1, out_feat_p)           fc_paper bias
    # wo_ref : (out_feat_p, out_feat_p)  fc_out weight, top (paper) half
    # c_ref  : (1, out_feat_p)           fc_time(time_emb) @ Wo_bot + bo  (f32)
    # out_ref: (TM, out_feat_p)

    # fc_paper on this row tile (f32 accumulation on the MXU).
    papers = (jnp.dot(x_ref[...], wp_ref[...],
                      preferred_element_type=jnp.float32)
              + bp_ref[...])

    # fc_out(cat([papers, times], -1)) == papers @ Wo_top + (times @ Wo_bot + bo)
    # where the second term is the precomputed constant row c.
    out = (jnp.dot(papers.astype(wo_ref.dtype), wo_ref[...],
                   preferred_element_type=jnp.float32)
           + c_ref[...])

    out_ref[...] = out.astype(out_ref.dtype)


def _round_up(x, m):
    return ((x + m - 1) // m) * m


def _pad2d(a, rows, cols):
    pr, pc = rows - a.shape[0], cols - a.shape[1]
    if pr or pc:
        a = jnp.pad(a, ((0, pr), (0, pc)))
    return a


def snapshot_encoder_mix(x_sel, time_emb, params, *,
                         tm_max=512, compute_dtype=jnp.float32):
    """Fused SnapshotEncoder (mode='mix') forward.

    x_sel    : (N, in_feat)  selected paper features (gather done by caller)
    time_emb : (1, in_feat)  time embedding
    params   : wp/bp, wt/bt (Linear in_feat->out_feat, W stored (in, out)),
               wo/bo (Linear 2*out_feat->out_feat).
    compute_dtype: MXU operand dtype; set jnp.bfloat16 on v6e/v7x for ~2x MXU
                   throughput / half the HBM bytes (accumulation stays f32).
    """
    N, in_feat = x_sel.shape
    out_feat = params["wp"].shape[1]

    # ---- N-independent constant row: fc_time(time_emb) @ Wo_bot + bo --------
    # Tiny (weight-sized) work, done once in f32 outside the hot loop.
    wo = params["wo"]
    times_row = (time_emb.astype(jnp.float32) @ params["wt"].astype(jnp.float32)
                 + params["bt"].astype(jnp.float32))
    const_row = (times_row @ wo[out_feat:, :].astype(jnp.float32)
                 + params["bo"].astype(jnp.float32))               # (1, out_feat)

    # ---- padding: lane-dense feature dims, sublane-aligned rows -------------
    in_p = _round_up(in_feat, 128)
    out_p = _round_up(out_feat, 128)

    n_p = _round_up(max(N, 8), 8)
    if n_p <= tm_max:
        tm = n_p
    else:
        tm = tm_max
        n_p = _round_up(N, tm)
    grid = (n_p // tm,)

    # Zero padding is exact: padded x columns hit zero weight rows, padded
    # weight/bias columns produce zero output columns (sliced off below).
    x_p = _pad2d(x_sel.astype(compute_dtype), n_p, in_p)
    wp = _pad2d(params["wp"].astype(compute_dtype), in_p, out_p)
    bp = _pad2d(params["bp"].astype(jnp.float32), 1, out_p)
    wo_top = _pad2d(wo[:out_feat, :].astype(compute_dtype), out_p, out_p)
    c_row = _pad2d(const_row, 1, out_p)

    resident = lambda shape: pl.BlockSpec(shape, lambda i: (0, 0))

    out_p_arr = pl.pallas_call(
        _snapshot_encoder_kernel,
        out_shape=jax.ShapeDtypeStruct((n_p, out_p), jnp.float32),
        grid=grid,
        in_specs=[
            pl.BlockSpec((tm, in_p), lambda i: (i, 0)),   # x row tile
            resident((in_p, out_p)),                      # wp
            resident((1, out_p)),                         # bp
            resident((out_p, out_p)),                     # wo_top
            resident((1, out_p)),                         # const row
        ],
        out_specs=pl.BlockSpec((tm, out_p), lambda i: (i, 0)),
        compiler_params=pltpu.CompilerParams(
            dimension_semantics=("parallel",)),
    )(x_p, wp, bp, wo_top, c_row)

    return out_p_arr[:N, :out_feat]


def _init_linear(key, fan_in, fan_out):
    # Deterministic init mimicking nn.Linear (uniform +/- 1/sqrt(fan_in)).
    kw, kb = jax.random.split(key)
    bound = 1.0 / jnp.sqrt(jnp.asarray(fan_in, jnp.float32))
    w = jax.random.uniform(kw, (fan_in, fan_out), jnp.float32, -bound, bound)
    b = jax.random.uniform(kb, (1, fan_out), jnp.float32, -bound, bound)
    return w, b


def _reference(x_sel, time_emb, params):
    papers = x_sel @ params["wp"] + params["bp"]
    times = jnp.tile(time_emb, (x_sel.shape[0], 1)) @ params["wt"] + params["bt"]
    cat = jnp.concatenate([papers, times], axis=-1)
    return cat @ params["wo"] + params["bo"]


if __name__ == "__main__":
    key = jax.random.PRNGKey(0)
    k_feat, k_time, k_ind, k1, k2, k3 = jax.random.split(key, 6)

    num_paper, in_feat, out_feat = 16, 32, 32

    # Graph surrogate: paper node features + a boolean target indicator.
    paper_feat = jax.random.normal(k_feat, (num_paper, in_feat), jnp.float32)
    time_emb = jax.random.normal(k_time, (1, in_feat), jnp.float32)
    tgt_indicator = (jnp.arange(num_paper) % 2 == 0)  # deterministic: 8 target papers

    # Host-side glue: data-dependent gather (torch.where + fancy indexing).
    paper_index = jnp.where(tgt_indicator)[0]
    x_sel = paper_feat[paper_index]  # (8, in_feat)

    wp, bp = _init_linear(k1, in_feat, out_feat)
    wt, bt = _init_linear(k2, in_feat, out_feat)
    wo, bo = _init_linear(k3, 2 * out_feat, out_feat)
    params = {"wp": wp, "bp": bp, "wt": wt, "bt": bt, "wo": wo, "bo": bo}

    out = snapshot_encoder_mix(x_sel, time_emb, params)
    out = jax.block_until_ready(out)

    ref = _reference(x_sel, time_emb, params)
    assert out.shape == (x_sel.shape[0], out_feat)
    assert jnp.allclose(out, ref, atol=1e-4, rtol=1e-4)

    print("KERNEL_OK")
</pallas_src>

<mosaic_0001>
module attributes {stable_mosaic.version = 11 : i64} {
  func.func @_snapshot_encoder_kernel(%arg0: i32, %arg1: memref<8x128xf32, #tpu.memory_space<vmem>>, %arg2: memref<128x128xf32, #tpu.memory_space<vmem>>, %arg3: memref<1x128xf32, #tpu.memory_space<vmem>>, %arg4: memref<128x128xf32, #tpu.memory_space<vmem>>, %arg5: memref<1x128xf32, #tpu.memory_space<vmem>>, %arg6: memref<8x128xf32, #tpu.memory_space<vmem>>) attributes {dimension_semantics = [#tpu.dimension_semantics<parallel>], iteration_bounds = array<i64: 1>, scalar_prefetch = 0 : i64, scratch_operands = 0 : i64, tpu.core_type = #tpu.core_type<tc>, window_params = [{transform_indices = @transform_0, window_bounds = array<i64: 8, 128>}, {pipeline_mode = #tpu.pipeline_mode<synchronous>, transform_indices = @transform_1, window_bounds = array<i64: 128, 128>}, {pipeline_mode = #tpu.pipeline_mode<synchronous>, transform_indices = @transform_2, window_bounds = array<i64: 1, 128>}, {pipeline_mode = #tpu.pipeline_mode<synchronous>, transform_indices = @transform_3, window_bounds = array<i64: 128, 128>}, {pipeline_mode = #tpu.pipeline_mode<synchronous>, transform_indices = @transform_4, window_bounds = array<i64: 1, 128>}, {transform_indices = @transform_5, window_bounds = array<i64: 8, 128>}]} {
    %c0 = arith.constant 0 : index
    %c0_0 = arith.constant 0 : index
    %0 = vector.load %arg1[%c0, %c0_0] : memref<8x128xf32, #tpu.memory_space<vmem>>, vector<8x128xf32>
    %c0_1 = arith.constant 0 : index
    %c0_2 = arith.constant 0 : index
    %1 = vector.load %arg2[%c0_1, %c0_2] : memref<128x128xf32, #tpu.memory_space<vmem>>, vector<128x128xf32>
    %cst = arith.constant dense<0.000000e+00> : vector<8x128xf32>
    %2 = tpu.matmul %0, %1, %cst {dimension_numbers = #tpu.dot_dimension_numbers<[1], [0], [0], [1], [0, 0, 1, 1], [], []>} : vector<8x128xf32>, vector<128x128xf32>, vector<8x128xf32> -> vector<8x128xf32>
    %c0_3 = arith.constant 0 : index
    %c0_4 = arith.constant 0 : index
    %3 = vector.load %arg3[%c0_3, %c0_4] : memref<1x128xf32, #tpu.memory_space<vmem>>, vector<1x128xf32>
    %4 = vector.broadcast %3 : vector<1x128xf32> to vector<8x128xf32>
    %5 = arith.addf %2, %4 : vector<8x128xf32>
    %c0_5 = arith.constant 0 : index
    %c0_6 = arith.constant 0 : index
    %6 = vector.load %arg4[%c0_5, %c0_6] : memref<128x128xf32, #tpu.memory_space<vmem>>, vector<128x128xf32>
    %cst_7 = arith.constant dense<0.000000e+00> : vector<8x128xf32>
    %7 = tpu.matmul %5, %6, %cst_7 {dimension_numbers = #tpu.dot_dimension_numbers<[1], [0], [0], [1], [0, 0, 1, 1], [], []>} : vector<8x128xf32>, vector<128x128xf32>, vector<8x128xf32> -> vector<8x128xf32>
    %c0_8 = arith.constant 0 : index
    %c0_9 = arith.constant 0 : index
    %8 = vector.load %arg5[%c0_8, %c0_9] : memref<1x128xf32, #tpu.memory_space<vmem>>, vector<1x128xf32>
    %9 = vector.broadcast %8 : vector<1x128xf32> to vector<8x128xf32>
    %10 = arith.addf %7, %9 : vector<8x128xf32>
    %c0_10 = arith.constant 0 : index
    %c0_11 = arith.constant 0 : index
    %11 = vector.load %arg6[%c0_10, %c0_11] : memref<8x128xf32, #tpu.memory_space<vmem>>, vector<8x128xf32>
    tpu.vector_store %arg6[%c0_10, %c0_11], %10 {strides = array<i32>} : memref<8x128xf32, #tpu.memory_space<vmem>>, vector<8x128xf32>,
    return
  }
  func.func @transform_0(%arg0: i32) -> (i32, i32) {
    %c0_i32 = arith.constant 0 : i32
    %c0_i32_0 = arith.constant 0 : i32
    return %arg0, %c0_i32 : i32, i32
  }
  func.func @transform_1(%arg0: i32) -> (i32, i32) {
    %c0_i32 = arith.constant 0 : i32
    %c0_i32_0 = arith.constant 0 : i32
    %c0_i32_1 = arith.constant 0 : i32
    return %c0_i32, %c0_i32_0 : i32, i32
  }
  func.func @transform_2(%arg0: i32) -> (i32, i32) {
    %c0_i32 = arith.constant 0 : i32
    %c0_i32_0 = arith.constant 0 : i32
    %c0_i32_1 = arith.constant 0 : i32
    return %c0_i32, %c0_i32_0 : i32, i32
  }
  func.func @transform_3(%arg0: i32) -> (i32, i32) {
    %c0_i32 = arith.constant 0 : i32
    %c0_i32_0 = arith.constant 0 : i32
    %c0_i32_1 = arith.constant 0 : i32
    return %c0_i32, %c0_i32_0 : i32, i32
  }
  func.func @transform_4(%arg0: i32) -> (i32, i32) {
    %c0_i32 = arith.constant 0 : i32
    %c0_i32_0 = arith.constant 0 : i32
    %c0_i32_1 = arith.constant 0 : i32
    return %c0_i32, %c0_i32_0 : i32, i32
  }
  func.func @transform_5(%arg0: i32) -> (i32, i32) {
    %c0_i32 = arith.constant 0 : i32
    %c0_i32_0 = arith.constant 0 : i32
    return %arg0, %c0_i32 : i32, i32
  }
}

</mosaic_0001>

<llo_original>
// kernel: tpu_custom_call.1
$region0: #{tpu_custom_call.1}
  #allocation0 [shape = 'u32[]', space=smem, size = 0x4, offset = 0x4, fixed_abs, tag = 'smem constant byte address 0x4 - core index']
  #allocation1 [shape = 'u32[72,128]{1,0:T(1,128)}', space=vmem, size = 0x9000, scoped, tag = 'internal scratch']
  %s0 = inlined_call_operand.hbm [shape: f32[8,128], index: 0, kind: input, shape index: {}]
  %s1 = inlined_call_operand.hbm [shape: f32[128,128], index: 1, kind: input, shape index: {}]
  %s2 = inlined_call_operand.vmem [shape: f32[1,128], index: 2, kind: input, shape index: {}]
  %s3 = inlined_call_operand.hbm [shape: f32[128,128], index: 3, kind: input, shape index: {}]
  %s4 = inlined_call_operand.vmem [shape: f32[1,128], index: 4, kind: input, shape index: {}]
  %s5 = inlined_call_operand.hbm [shape: f32[8,128], index: 5, kind: output, shape index: {}]
  %s6 = sld [smem:[#allocation0]]
  $region42: #{tpu_custom_call.1} parent=0
    _
  %s8 = ssub.s32 1, %s6
  %s9 = scalar_select 0, %s8, %s6
  $region1: #{tpu_custom_call.1} parent=0
    #allocation2 [shape = 'u8[4096]{0}', space=vmem, size = 0x1000, scoped, tag = 'input window, operand 0, single buffered']
    #allocation3 [shape = 's32[1]{0}', space=sflag, size = 0x4, scoped, tag = 'scoped memory for tpu_custom_call.1']
    #allocation4 [shape = 's32[1]{0}', space=sflag, size = 0x4, scoped, tag = 'scoped memory for tpu_custom_call.1']
    #allocation5 [shape = 'u8[65536]{0}', space=vmem, size = 0x10000, scoped, tag = 'input window, operand 1, single buffered']
    #allocation6 [shape = 's32[1]{0}', space=sflag, size = 0x4, scoped, tag = 'scoped memory for tpu_custom_call.1']
    #allocation7 [shape = 'u8[65536]{0}', space=vmem, size = 0x10000, scoped, tag = 'input window, operand 3, single buffered']
    #allocation8 [shape = 'u8[4096]{0}', space=vmem, size = 0x1000, scoped, tag = 'output window, operand 0, single buffered']
    %10 = vsyncpa [#allocation3], 0
    %11 = vsyncpa [#allocation6], 0
    %12 = vsyncpa [#allocation4], 0
    // Predicated region
    $region2: #{tpu_custom_call.1} parent=1 // pred_check
      _
    $region3: #{tpu_custom_call.1} parent=1 // pred_check_branch
      %14 = sbr.rel (0) target = $region5
    $region4: #{tpu_custom_call.1} parent=1 // pred_region
      %16 = vsyncadd [#allocation3], 0
      %s18 = sshll.u32 %s0, 4
      %s19 = int_to_ptr.hbm [resolvable:$true] %s18
      %s20 = sshll.u32 [#allocation2], 4
      %s21 = int_to_ptr.vmem [resolvable:$true] %s20
      %23 = dma.hbm_to_vmem [thread:$0]  %s19, 128, %s21, [#allocation3]
    $region5: #{tpu_custom_call.1} parent=1 // pred_fallthru
      _
    // Predicated region
    $region6: #{tpu_custom_call.1} parent=1 // pred_check
      _
    $region7: #{tpu_custom_call.1} parent=1 // pred_check_branch
      %25 = sbr.rel (0) target = $region9
    $region8: #{tpu_custom_call.1} parent=1 // pred_region
      %27 = vsyncadd [#allocation6], 0
      %s28 = sshll.u32 %s1, 4
      %s29 = int_to_ptr.hbm [resolvable:$true] %s28
      %s30 = sshll.u32 [#allocation5], 4
      %s31 = int_to_ptr.vmem [resolvable:$true] %s30
      %36 = dma.hbm_to_vmem [thread:$0]  %s29, 2048, %s31, [#allocation6], 128, 128, 8
    $region9: #{tpu_custom_call.1} parent=1 // pred_fallthru
      _
    // Predicated region
    $region10: #{tpu_custom_call.1} parent=1 // pred_check
      _
    $region11: #{tpu_custom_call.1} parent=1 // pred_check_branch
      %38 = sbr.rel (0) target = $region13
    $region12: #{tpu_custom_call.1} parent=1 // pred_region
      _
    $region13: #{tpu_custom_call.1} parent=1 // pred_fallthru
      _
    // Predicated region
    $region14: #{tpu_custom_call.1} parent=1 // pred_check
      _
    $region15: #{tpu_custom_call.1} parent=1 // pred_check_branch
      %40 = sbr.rel (0) target = $region17
    $region16: #{tpu_custom_call.1} parent=1 // pred_region
      %42 = vsyncadd [#allocation6], 0
      %s43 = sshll.u32 %s3, 4
      %s44 = int_to_ptr.hbm [resolvable:$true] %s43
      %s45 = sshll.u32 [#allocation7], 4
      %s46 = int_to_ptr.vmem [resolvable:$true] %s45
      %51 = dma.hbm_to_vmem [thread:$0]  %s44, 2048, %s46, [#allocation6], 128, 128, 8
    $region17: #{tpu_custom_call.1} parent=1 // pred_fallthru
      _
    // Predicated region
    $region18: #{tpu_custom_call.1} parent=1 // pred_check
      _
    $region19: #{tpu_custom_call.1} parent=1 // pred_check_branch
      %53 = sbr.rel (0) target = $region21
    $region20: #{tpu_custom_call.1} parent=1 // pred_region
      _
    $region21: #{tpu_custom_call.1} parent=1 // pred_fallthru
      _
    // Predicated region
    $region22: #{tpu_custom_call.1} parent=1 // pred_check
      _
    $region23: #{tpu_custom_call.1} parent=1 // pred_check_branch
      %55 = sbr.rel (0) target = $region25
    $region24: #{tpu_custom_call.1} parent=1 // pred_region
      %57 = dma.done [#allocation3], 128
    $region25: #{tpu_custom_call.1} parent=1 // pred_fallthru
      _
    // Predicated region
    $region26: #{tpu_custom_call.1} parent=1 // pred_check
      _
    $region27: #{tpu_custom_call.1} parent=1 // pred_check_branch
      %59 = sbr.rel (0) target = $region29
    $region28: #{tpu_custom_call.1} parent=1 // pred_region
      %61 = dma.done [#allocation6], 2048
    $region29: #{tpu_custom_call.1} parent=1 // pred_fallthru
      _
    // Predicated region
    $region30: #{tpu_custom_call.1} parent=1 // pred_check
      _
    $region31: #{tpu_custom_call.1} parent=1 // pred_check_branch
      %63 = sbr.rel (0) target = $region33
    $region32: #{tpu_custom_call.1} parent=1 // pred_region
      %65 = dma.done [#allocation6], 2048
    $region33: #{tpu_custom_call.1} parent=1 // pred_fallthru
      _
    %v66 = vld [vmem:[#allocation2] sm:$0xff]
    %v67 = vld [vmem:[#allocation5] sm:$0xff]
    %v68 = vld [vmem:[#allocation5 + $0x8] sm:$0xff]
    %v69 = vld [vmem:[#allocation5 + $0x10] sm:$0xff]
    %v70 = vld [vmem:[#allocation5 + $0x18] sm:$0xff]
    %v71 = vld [vmem:[#allocation5 + $0x20] sm:$0xff]
    %v72 = vld [vmem:[#allocation5 + $0x28] sm:$0xff]
    %v73 = vld [vmem:[#allocation5 + $0x30] sm:$0xff]
    %v74 = vld [vmem:[#allocation5 + $0x38] sm:$0xff]
    %v75 = vld [vmem:[#allocation5 + $0x40] sm:$0xff]
    %v76 = vld [vmem:[#allocation5 + $0x48] sm:$0xff]
    %v77 = vld [vmem:[#allocation5 + $0x50] sm:$0xff]
    %v78 = vld [vmem:[#allocation5 + $0x58] sm:$0xff]
    %v79 = vld [vmem:[#allocation5 + $0x60] sm:$0xff]
    %v80 = vld [vmem:[#allocation5 + $0x68] sm:$0xff]
    %v81 = vld [vmem:[#allocation5 + $0x70] sm:$0xff]
    %v82 = vld [vmem:[#allocation5 + $0x78] sm:$0xff]
    %v83 = vld [vmem:[%s2] sm:$0x1]
    %v85 = vperm.slane %v83, 0
    %87 = vmatpush.msra.mxu0 %v82
    %88 = vmatpush.msra.mxu0 %v81
    %89 = vmatpush.msra.mxu0 %v80
    %90 = vmatpush.msra.mxu0 %v79
    %91 = vmatpush.msra.mxu0 %v78
    %92 = vmatpush.msra.mxu0 %v77
    %93 = vmatpush.msra.mxu0 %v76
    %94 = vmatpush.msra.mxu0 %v75
    %95 = vmatpush.msra.mxu0 %v74
    %96 = vmatpush.msra.mxu0 %v73
    %97 = vmatpush.msra.mxu0 %v72
    %98 = vmatpush.msra.mxu0 %v71
    %99 = vmatpush.msra.mxu0 %v70
    %100 = vmatpush.msra.mxu0 %v69
    %101 = vmatpush.msra.mxu0 %v68
    %102 = vmatpush.msra.mxu0 %v67
    %103 = vmatmul.f32.gmra.mxu0 %v66
    %v104 = vpop.f32.mrf.mxu0
    %v105 = vadd.f32 %v85, %v104
    %106 = vdwg.mxu0
    %v107 = vld [vmem:[#allocation7] sm:$0xff]
    %v108 = vld [vmem:[#allocation7 + $0x8] sm:$0xff]
    %v109 = vld [vmem:[#allocation7 + $0x10] sm:$0xff]
    %v110 = vld [vmem:[#allocation7 + $0x18] sm:$0xff]
    %v111 = vld [vmem:[#allocation7 + $0x20] sm:$0xff]
    %v112 = vld [vmem:[#allocation7 + $0x28] sm:$0xff]
    %v113 = vld [vmem:[#allocation7 + $0x30] sm:$0xff]
    %v114 = vld [vmem:[#allocation7 + $0x38] sm:$0xff]
    %v115 = vld [vmem:[#allocation7 + $0x40] sm:$0xff]
    %v116 = vld [vmem:[#allocation7 + $0x48] sm:$0xff]
    %v117 = vld [vmem:[#allocation7 + $0x50] sm:$0xff]
    %v118 = vld [vmem:[#allocation7 + $0x58] sm:$0xff]
    %v119 = vld [vmem:[#allocation7 + $0x60] sm:$0xff]
    %v120 = vld [vmem:[#allocation7 + $0x68] sm:$0xff]
    %v121 = vld [vmem:[#allocation7 + $0x70] sm:$0xff]
    %v122 = vld [vmem:[#allocation7 + $0x78] sm:$0xff]
    %v123 = vld [vmem:[%s4] sm:$0x1]
    %v125 = vperm.slane %v123, 0
    %127 = vmatpush.msra.mxu0 %v122
    %128 = vmatpush.msra.mxu0 %v121
    %129 = vmatpush.msra.mxu0 %v120
    %130 = vmatpush.msra.mxu0 %v119
    %131 = vmatpush.msra.mxu0 %v118
    %132 = vmatpush.msra.mxu0 %v117
    %133 = vmatpush.msra.mxu0 %v116
    %134 = vmatpush.msra.mxu0 %v115
    %135 = vmatpush.msra.mxu0 %v114
    %136 = vmatpush.msra.mxu0 %v113
    %137 = vmatpush.msra.mxu0 %v112
    %138 = vmatpush.msra.mxu0 %v111
    %139 = vmatpush.msra.mxu0 %v110
    %140 = vmatpush.msra.mxu0 %v109
    %141 = vmatpush.msra.mxu0 %v108
    %142 = vmatpush.msra.mxu0 %v107
    %143 = vmatmul.f32.gmra.mxu0 %v105
    %v144 = vpop.f32.mrf.mxu0
    %v145 = vadd.f32 %v125, %v144
    %146 = vdwg.mxu0
    %147 = vst [vmem:[#allocation8] sm:$0xff] %v145
    // Predicated region
    $region34: #{tpu_custom_call.1} parent=1 // pred_check
      _
    $region35: #{tpu_custom_call.1} parent=1 // pred_check_branch
      %149 = sbr.rel (0) target = $region37
    $region36: #{tpu_custom_call.1} parent=1 // pred_region
      %151 = vsyncadd [#allocation4], 0
      %s153 = sshll.u32 [#allocation8], 4
      %s154 = int_to_ptr.vmem [resolvable:$true] %s153
      %s155 = sshll.u32 %s5, 4
      %s156 = int_to_ptr.hbm [resolvable:$true] %s155
      %158 = dma.vmem_to_hbm [thread:$0]  %s154, 128, %s156, [#allocation4]
    $region37: #{tpu_custom_call.1} parent=1 // pred_fallthru
      _
    // Predicated region
    $region38: #{tpu_custom_call.1} parent=1 // pred_check
      _
    $region39: #{tpu_custom_call.1} parent=1 // pred_check_branch
      %160 = sbr.rel (0) target = $region41
    $region40: #{tpu_custom_call.1} parent=1 // pred_region
      %162 = dma.done [#allocation4], 128
    $region41: #{tpu_custom_call.1} parent=1 // pred_fallthru
      _
    %163 = vsyncpa [#allocation3], 1
    %164 = vsyncpa [#allocation6], 1
    %165 = vsyncpa [#allocation4], 1

</llo_original>
